<compile_context>
chip_gen: v7x
topology: tpu7x:2x2x1
jax: 0.10.0
libtpu: 0.0.40
codegen_flags: <defaults>
</compile_context>

<pallas_src>
import functools
import math

import jax
import jax.numpy as jnp
from jax.experimental import pallas as pl
from jax.experimental.pallas import tpu as pltpu


def layernorm_kernel(x_ref, a_ref, b_ref, o_ref, *, eps, features):
    # x_ref: (TR, F) row tile; a_ref / b_ref: (1, F)
    x = x_ref[...].astype(jnp.float32)                        # (TR, F)

    # Single-pass reductions over the lane (feature) axis.
    s1 = jnp.sum(x, axis=-1, keepdims=True)                   # (TR, 1)
    s2 = jnp.sum(x * x, axis=-1, keepdims=True)               # (TR, 1)
    mean = s1 * (1.0 / features)
    # torch.std uses Bessel's correction (N-1). Clamp tiny negatives caused by the
    # sum-of-squares cancellation. (features == 1 -> 0/0 = NaN, same as torch.)
    var = jnp.maximum((s2 - s1 * mean) / (features - 1), 0.0)
    std = jnp.sqrt(var)

    # Per-row reciprocal of (std + eps): EUP path; one Newton step restores ~f32
    # accuracy (error ~ approx_error^2) at negligible cost on a (TR, 1) vector.
    d = std + eps
    inv = pl.reciprocal(d, approx=True)
    inv = inv * (2.0 - d * inv)                               # (TR, 1)

    a = a_ref[...].astype(jnp.float32)                        # (1, F)
    b = b_ref[...].astype(jnp.float32)                        # (1, F)
    out = (x - mean) * inv * a + b                            # (TR, F), VPU only
    o_ref[...] = out.astype(o_ref.dtype)


def _choose_row_tile(n_rows, features, itemsize):
    """Rows per tile: target ~2 MiB per pipeline buffer (measured >=85% of HBM
    roofline on v6e at this size) while keeping double-buffered in+out plus f32
    temps comfortably inside v7x's 64 MiB VMEM (and v5e's smaller scoped default)."""
    target_tile_bytes = 2 * 1024 * 1024
    rows = target_tile_bytes // max(1, features * itemsize)
    rows = max(8, min(int(rows), 2048))
    rows = (rows // 8) * 8                                    # sublane-aligned
    if n_rows <= rows:
        return n_rows        # full-extent block is always a legal block shape
    return rows


def layer_norm(x, a_2, b_2, eps=1e-6):
    """x: (..., F); a_2, b_2: (F,). Normalization over the last axis."""
    orig_shape = x.shape
    feat = orig_shape[-1]
    n_rows = math.prod(orig_shape[:-1])

    x2 = x.reshape(n_rows, feat)                              # layout-only reshape
    a2 = a_2.reshape(1, feat)
    b2 = b_2.reshape(1, feat)

    itemsize = jnp.dtype(x.dtype).itemsize
    tr = _choose_row_tile(n_rows, feat, max(itemsize, 4))     # size for f32 temps
    grid = (pl.cdiv(n_rows, tr),)   # ragged tail handled by Pallas OOB masking

    kernel = functools.partial(layernorm_kernel, eps=eps, features=feat)

    out = pl.pallas_call(
        kernel,
        out_shape=jax.ShapeDtypeStruct((n_rows, feat), x.dtype),
        grid_spec=pltpu.PrefetchScalarGridSpec(
            num_scalar_prefetch=0,
            grid=grid,
            in_specs=[
                pl.BlockSpec((tr, feat), lambda i: (i, 0)),
                pl.BlockSpec((1, feat), lambda i: (0, 0)),
                pl.BlockSpec((1, feat), lambda i: (0, 0)),
            ],
            out_specs=pl.BlockSpec((tr, feat), lambda i: (i, 0)),
        ),
        compiler_params=pltpu.CompilerParams(
            # Many independent row tiles -> shards across v7x's 2 TensorCores.
            dimension_semantics=("parallel",),
            # Headroom over the default scoped limit (16 MiB on v5e), still well
            # under every generation's physical VMEM (64 MiB on v7x).
            vmem_limit_bytes=48 * 1024 * 1024,
        ),
    )(x2, a2, b2)

    return out.reshape(orig_shape)


if __name__ == "__main__":
    key = jax.random.PRNGKey(0)
    B, S, F = 2, 8, 32
    x = jax.random.normal(key, (B, S, F), dtype=jnp.float32)

    # Deterministic parameter init matching nn.Parameter(torch.ones/zeros(features)).
    a_2 = jnp.ones((F,), dtype=jnp.float32)
    b_2 = jnp.zeros((F,), dtype=jnp.float32)
    eps = 1e-6

    out = layer_norm(x, a_2, b_2, eps)
    out = jax.block_until_ready(out)

    # Pure-JAX reference check (same unbiased-std formula as torch.std).
    mean = jnp.mean(x, axis=-1, keepdims=True)
    std = jnp.sqrt(jnp.sum((x - mean) ** 2, axis=-1, keepdims=True) / (F - 1))
    ref = a_2 * (x - mean) / (std + eps) + b_2
    assert jnp.allclose(out, ref, atol=1e-5, rtol=1e-5), "mismatch vs reference"

    print("KERNEL_OK")
</pallas_src>

<mosaic_0001>
module attributes {stable_mosaic.version = 11 : i64} {
  func.func @layernorm_kernel(%arg0: i32, %arg1: memref<16x32xf32, #tpu.memory_space<vmem>>, %arg2: memref<1x32xf32, #tpu.memory_space<vmem>>, %arg3: memref<1x32xf32, #tpu.memory_space<vmem>>, %arg4: memref<16x32xf32, #tpu.memory_space<vmem>>) attributes {dimension_semantics = [#tpu.dimension_semantics<parallel>], iteration_bounds = array<i64: 1>, scalar_prefetch = 0 : i64, scratch_operands = 0 : i64, tpu.core_type = #tpu.core_type<tc>, window_params = [{transform_indices = @transform_0, window_bounds = array<i64: 16, 32>}, {pipeline_mode = #tpu.pipeline_mode<synchronous>, transform_indices = @transform_1, window_bounds = array<i64: 1, 32>}, {pipeline_mode = #tpu.pipeline_mode<synchronous>, transform_indices = @transform_2, window_bounds = array<i64: 1, 32>}, {transform_indices = @transform_3, window_bounds = array<i64: 16, 32>}]} {
    %c0 = arith.constant 0 : index
    %c0_0 = arith.constant 0 : index
    %0 = vector.load %arg1[%c0, %c0_0] : memref<16x32xf32, #tpu.memory_space<vmem>>, vector<16x32xf32>
    %cst = arith.constant dense<0.000000e+00> : vector<16xf32>
    %1 = vector.multi_reduction <add>, %0, %cst [1] : vector<16x32xf32> to vector<16xf32>
    %2 = vector.shape_cast %1 : vector<16xf32> to vector<16x1xf32>
    %3 = arith.mulf %0, %0 : vector<16x32xf32>
    %cst_1 = arith.constant dense<0.000000e+00> : vector<16xf32>
    %4 = vector.multi_reduction <add>, %3, %cst_1 [1] : vector<16x32xf32> to vector<16xf32>
    %5 = vector.shape_cast %4 : vector<16xf32> to vector<16x1xf32>
    %cst_2 = arith.constant 3.125000e-02 : f32
    %6 = vector.broadcast %cst_2 : f32 to vector<16x1xf32>
    %7 = arith.mulf %2, %6 : vector<16x1xf32>
    %8 = arith.mulf %2, %7 : vector<16x1xf32>
    %9 = arith.subf %5, %8 : vector<16x1xf32>
    %cst_3 = arith.constant 3.100000e+01 : f32
    %10 = vector.broadcast %cst_3 : f32 to vector<16x1xf32>
    %11 = arith.divf %9, %10 : vector<16x1xf32>
    %cst_4 = arith.constant 0.000000e+00 : f32
    %12 = vector.broadcast %cst_4 : f32 to vector<16x1xf32>
    %13 = arith.maximumf %11, %12 : vector<16x1xf32>
    %14 = math.sqrt %13 : vector<16x1xf32>
    %cst_5 = arith.constant 9.99999997E-7 : f32
    %15 = vector.broadcast %cst_5 : f32 to vector<16x1xf32>
    %16 = arith.addf %14, %15 : vector<16x1xf32>
    %17 = tpu.reciprocal %16 {approx = true} : vector<16x1xf32> -> vector<16x1xf32>
    %18 = arith.mulf %16, %17 : vector<16x1xf32>
    %cst_6 = arith.constant 2.000000e+00 : f32
    %19 = vector.broadcast %cst_6 : f32 to vector<16x1xf32>
    %20 = arith.subf %19, %18 : vector<16x1xf32>
    %21 = arith.mulf %17, %20 : vector<16x1xf32>
    %c0_7 = arith.constant 0 : index
    %c0_8 = arith.constant 0 : index
    %22 = vector.load %arg2[%c0_7, %c0_8] : memref<1x32xf32, #tpu.memory_space<vmem>>, vector<1x32xf32>
    %c0_9 = arith.constant 0 : index
    %c0_10 = arith.constant 0 : index
    %23 = vector.load %arg3[%c0_9, %c0_10] : memref<1x32xf32, #tpu.memory_space<vmem>>, vector<1x32xf32>
    %24 = vector.broadcast %7 : vector<16x1xf32> to vector<16x32xf32>
    %25 = arith.subf %0, %24 : vector<16x32xf32>
    %26 = vector.broadcast %21 : vector<16x1xf32> to vector<16x32xf32>
    %27 = arith.mulf %25, %26 : vector<16x32xf32>
    %28 = vector.broadcast %22 : vector<1x32xf32> to vector<16x32xf32>
    %29 = arith.mulf %27, %28 : vector<16x32xf32>
    %30 = vector.broadcast %23 : vector<1x32xf32> to vector<16x32xf32>
    %31 = arith.addf %29, %30 : vector<16x32xf32>
    %c0_11 = arith.constant 0 : index
    %c0_12 = arith.constant 0 : index
    %32 = vector.load %arg4[%c0_11, %c0_12] : memref<16x32xf32, #tpu.memory_space<vmem>>, vector<16x32xf32>
    tpu.vector_store %arg4[%c0_11, %c0_12], %31 {strides = array<i32>} : memref<16x32xf32, #tpu.memory_space<vmem>>, vector<16x32xf32>,
    return
  }
  func.func @transform_0(%arg0: i32) -> (i32, i32) {
    %c0_i32 = arith.constant 0 : i32
    %c0_i32_0 = arith.constant 0 : i32
    return %arg0, %c0_i32 : i32, i32
  }
  func.func @transform_1(%arg0: i32) -> (i32, i32) {
    %c0_i32 = arith.constant 0 : i32
    %c0_i32_0 = arith.constant 0 : i32
    %c0_i32_1 = arith.constant 0 : i32
    return %c0_i32, %c0_i32_0 : i32, i32
  }
  func.func @transform_2(%arg0: i32) -> (i32, i32) {
    %c0_i32 = arith.constant 0 : i32
    %c0_i32_0 = arith.constant 0 : i32
    %c0_i32_1 = arith.constant 0 : i32
    return %c0_i32, %c0_i32_0 : i32, i32
  }
  func.func @transform_3(%arg0: i32) -> (i32, i32) {
    %c0_i32 = arith.constant 0 : i32
    %c0_i32_0 = arith.constant 0 : i32
    return %arg0, %c0_i32 : i32, i32
  }
}

</mosaic_0001>

<llo_original>
// kernel: tpu_custom_call.1
$region0: #{tpu_custom_call.1}
  #allocation0 [shape = 'u32[]', space=smem, size = 0x4, offset = 0x4, fixed_abs, tag = 'smem constant byte address 0x4 - core index']
  #allocation1 [shape = 'u32[144,128]{1,0:T(1,128)}', space=vmem, size = 0x12000, scoped, tag = 'internal scratch']
  %s0 = inlined_call_operand.hbm [shape: f32[16,32], index: 0, kind: input, shape index: {}]
  %s1 = inlined_call_operand.vmem [shape: f32[1,32], index: 1, kind: input, shape index: {}]
  %s2 = inlined_call_operand.vmem [shape: f32[1,32], index: 2, kind: input, shape index: {}]
  %s3 = inlined_call_operand.hbm [shape: f32[16,32], index: 3, kind: output, shape index: {}]
  %s4 = sld [smem:[#allocation0]]
  $region26: #{tpu_custom_call.1} parent=0
    _
  %s6 = ssub.s32 1, %s4
  %s7 = scalar_select 0, %s6, %s4
  $region1: #{tpu_custom_call.1} parent=0
    #allocation2 [shape = 'u8[8192]{0}', space=vmem, size = 0x2000, scoped, tag = 'input window, operand 0, single buffered']
    #allocation3 [shape = 's32[1]{0}', space=sflag, size = 0x4, scoped, tag = 'scoped memory for tpu_custom_call.1']
    #allocation4 [shape = 's32[1]{0}', space=sflag, size = 0x4, scoped, tag = 'scoped memory for tpu_custom_call.1']
    #allocation5 [shape = 'u8[8192]{0}', space=vmem, size = 0x2000, scoped, tag = 'output window, operand 0, single buffered']
    %8 = vsyncpa [#allocation3], 0
    %9 = vsyncpa [#allocation4], 0
    // Predicated region
    $region2: #{tpu_custom_call.1} parent=1 // pred_check
      _
    $region3: #{tpu_custom_call.1} parent=1 // pred_check_branch
      %11 = sbr.rel (0) target = $region5
    $region4: #{tpu_custom_call.1} parent=1 // pred_region
      %s13 = ssub.s32 256, 256
      %14 = vsyncadd [#allocation3], %s13
      %s15 = sshll.u32 [#allocation2], 4
      %s16 = int_to_ptr.vmem [resolvable:$true] %s15
      %21 = dma.hbm_to_vmem [thread:$0]  %s0, 256, %s16, [#allocation3], 128, 128, 8
    $region5: #{tpu_custom_call.1} parent=1 // pred_fallthru
      _
    // Predicated region
    $region6: #{tpu_custom_call.1} parent=1 // pred_check
      _
    $region7: #{tpu_custom_call.1} parent=1 // pred_check_branch
      %23 = sbr.rel (0) target = $region9
    $region8: #{tpu_custom_call.1} parent=1 // pred_region
      _
    $region9: #{tpu_custom_call.1} parent=1 // pred_fallthru
      _
    // Predicated region
    $region10: #{tpu_custom_call.1} parent=1 // pred_check
      _
    $region11: #{tpu_custom_call.1} parent=1 // pred_check_branch
      %25 = sbr.rel (0) target = $region13
    $region12: #{tpu_custom_call.1} parent=1 // pred_region
      _
    $region13: #{tpu_custom_call.1} parent=1 // pred_fallthru
      _
    // Predicated region
    $region14: #{tpu_custom_call.1} parent=1 // pred_check
      _
    $region15: #{tpu_custom_call.1} parent=1 // pred_check_branch
      %27 = sbr.rel (0) target = $region17
    $region16: #{tpu_custom_call.1} parent=1 // pred_region
      %28 = dma.done [#allocation3], 256
    $region17: #{tpu_custom_call.1} parent=1 // pred_fallthru
      _
    %v29 = vld [vmem:[#allocation2] sm:$0xff]
    %v30 = vld [vmem:[#allocation2 + $0x8] sm:$0xff]
    %vm31 = vcmask 261120
    %v32 = vsel %vm31, %v29, 0.0
    %33 = vadd.xlane.f32.xlu0 %v32
    %v34 = vpop.xlane.xlu0 %33
    %v35 = vsel %vm31, %v30, 0.0
    %36 = vadd.xlane.f32.xlu0 %v35
    %v37 = vpop.xlane.xlu0 %36
    %v38 = vmul.f32 %v29, %v29
    %v39 = vmul.f32 %v30, %v30
    %v40 = vsel %vm31, %v38, 0.0
    %41 = vadd.xlane.f32.xlu0 %v40
    %v42 = vpop.xlane.xlu0 %41
    %v43 = vsel %vm31, %v39, 0.0
    %44 = vadd.xlane.f32.xlu0 %v43
    %v45 = vpop.xlane.xlu0 %44
    %v46 = vmul.f32 %v34, 0.03125
    %v47 = vmul.f32 %v37, 0.03125
    %v48 = vmul.f32 %v34, %v46
    %v49 = vmul.f32 %v37, %v47
    %v50 = vsub.f32 %v42, %v48
    %v51 = vsub.f32 %v45, %v49
    %v52 = vrcp.pop 31.0
    %v53 = vmul.f32 %v50, %v52
    %v54 = vmul.f32 %v51, %v52
    %v55 = vmax.f32 %v53, 0.0
    %v56 = vmax.f32 %v54, 0.0
    %v57 = vrsqrt.pop %v55
    %v58 = vmul.f32 %v55, %v57
    %vm59 = vcmp.eq.f32.partialorder %v55, inf
    %v60 = vsel %vm59, %v55, %v58
    %vm61 = vcmp.eq.f32.partialorder %v55, 0.0
    %v62 = vand.u32 %v55, 2147483648
    %v63 = vsel %vm61, %v62, %v60
    %v64 = vrsqrt.pop %v56
    %v65 = vmul.f32 %v56, %v64
    %vm66 = vcmp.eq.f32.partialorder %v56, inf
    %v67 = vsel %vm66, %v56, %v65
    %vm68 = vcmp.eq.f32.partialorder %v56, 0.0
    %v69 = vand.u32 %v56, 2147483648
    %v70 = vsel %vm68, %v69, %v67
    %v71 = vadd.f32 %v63, 1e-06
    %v72 = vadd.f32 %v70, 1e-06
    %v73 = vrcp.pop %v71
    %v74 = vrcp.pop %v72
    %v75 = vmul.f32 %v71, %v73
    %v76 = vmul.f32 %v72, %v74
    %v77 = vsub.f32 2.0, %v75
    %v78 = vsub.f32 2.0, %v76
    %v79 = vmul.f32 %v73, %v77
    %v80 = vmul.f32 %v74, %v78
    %v81 = vld [vmem:[%s1] sm:$0x1]
    %v82 = vld [vmem:[%s2] sm:$0x1]
    %v83 = vsub.f32 %v29, %v46
    %v84 = vsub.f32 %v30, %v47
    %v85 = vmul.f32 %v83, %v79
    %v86 = vmul.f32 %v84, %v80
    %v88 = vlaneseq
    %v89 = vshrl.u32 %v88, 7
    %v90 = vsub.s32 0, %v89
    %v91 = vrot.slane %v81, %v90
    %v93 = vmul.f32 %v85, %v91
    %v94 = vmul.f32 %v86, %v91
    %v96 = vlaneseq
    %v97 = vshrl.u32 %v96, 7
    %v98 = vsub.s32 0, %v97
    %v99 = vrot.slane %v82, %v98
    %v101 = vadd.f32 %v93, %v99
    %v102 = vadd.f32 %v94, %v99
    %103 = vst.msk [vmem:[#allocation5] sm:$0xff] %vm31, %v101
    %104 = vst.msk [vmem:[#allocation5 + $0x8] sm:$0xff] %vm31, %v102
    // Predicated region
    $region18: #{tpu_custom_call.1} parent=1 // pred_check
      _
    $region19: #{tpu_custom_call.1} parent=1 // pred_check_branch
      %106 = sbr.rel (0) target = $region21
    $region20: #{tpu_custom_call.1} parent=1 // pred_region
      %s108 = ssub.s32 256, 256
      %109 = vsyncadd [#allocation4], %s108
      %s110 = sshll.u32 [#allocation5], 4
      %s111 = int_to_ptr.vmem [resolvable:$true] %s110
      %116 = dma.vmem_to_hbm [thread:$0]  %s111, 256, %s3, [#allocation4], 128, 128, 8
    $region21: #{tpu_custom_call.1} parent=1 // pred_fallthru
      _
    // Predicated region
    $region22: #{tpu_custom_call.1} parent=1 // pred_check
      _
    $region23: #{tpu_custom_call.1} parent=1 // pred_check_branch
      %118 = sbr.rel (0) target = $region25
    $region24: #{tpu_custom_call.1} parent=1 // pred_region
      %119 = dma.done [#allocation4], 256
    $region25: #{tpu_custom_call.1} parent=1 // pred_fallthru
      _
    %120 = vsyncpa [#allocation3], 1
    %121 = vsyncpa [#allocation4], 1

</llo_original>
